<compile_context>
chip_gen: v7x
topology: tpu7x:2x2x1
jax: 0.10.0
libtpu: 0.0.40
codegen_flags: <defaults>
</compile_context>

<pallas_src>
import jax
import jax.numpy as jnp
from jax.experimental import pallas as pl
from jax.experimental.pallas import tpu as pltpu


# ---------------------------------------------------------------------------
# Fused single-pass kernel: per-batch slab resident in VMEM.
# ---------------------------------------------------------------------------
def _make_fused_kernel(hw):
    inv_hw = 1.0 / float(hw)

    def kernel(x_ref, w1t_ref, w2_ref, o_ref):
        # x_ref: (1, C, HW)   w1t_ref: (C, Cr)   w2_ref: (C, Cr)   o_ref: (1, C, HW)
        x = x_ref[0]                                                     # (C, HW)
        mean = jnp.sum(x.astype(jnp.float32), axis=1, keepdims=True) * inv_hw  # (C, 1)
        # Linear(C->Cr, no bias) + ReLU:   h[r] = relu(sum_c mean[c] * w1[r, c])
        h = jnp.maximum(jnp.sum(mean * w1t_ref[...], axis=0, keepdims=True), 0.0)  # (1, Cr)
        # Linear(Cr->C, no bias) + Sigmoid: s[c] = sigmoid(sum_r h[r] * w2[c, r])
        z = jnp.sum(h * w2_ref[...], axis=1, keepdims=True)             # (C, 1)
        s = 1.0 / (1.0 + jnp.exp(-z))
        o_ref[0] = x * s.astype(x.dtype)                                 # lane broadcast

    return kernel


# ---------------------------------------------------------------------------
# Two-pass streamed path (large slabs).
# Pass 1: streamed spatial sum (f32, resident output) + fused excitation MLP.
# ---------------------------------------------------------------------------
def _make_squeeze_excite_kernel(hw, tile_hw, n_tiles, needs_mask):
    inv_hw = 1.0 / float(hw)

    def kernel(x_ref, w1t_ref, w2_ref, s_ref):
        # x_ref: (1, C, tile_hw)   w1t/w2: (C, Cr)   s_ref: (1, C, 1) f32 (resident)
        t = pl.program_id(1)

        @pl.when(t == 0)
        def _init():
            s_ref[...] = jnp.zeros_like(s_ref)

        x = x_ref[0].astype(jnp.float32)                                 # (C, tile_hw)
        if needs_mask:  # tail tile: zero lanes past the true HW extent
            lane = jax.lax.broadcasted_iota(jnp.int32, x.shape, 1)
            x = jnp.where(lane < (hw - t * tile_hw), x, 0.0)
        s_ref[0] += jnp.sum(x, axis=1, keepdims=True)

        @pl.when(t == n_tiles - 1)
        def _finalize():
            mean = s_ref[0] * inv_hw                                     # (C, 1)
            h = jnp.maximum(jnp.sum(mean * w1t_ref[...], axis=0, keepdims=True), 0.0)
            z = jnp.sum(h * w2_ref[...], axis=1, keepdims=True)         # (C, 1)
            s_ref[0] = 1.0 / (1.0 + jnp.exp(-z))

    return kernel


# Pass 2: tiled, pipelined elementwise rescale (bandwidth-bound, fully parallel).
def _rescale_kernel(x_ref, s_ref, o_ref):
    # x_ref: (1, C, tile_hw)   s_ref: (1, C, 1) f32   o_ref: (1, C, tile_hw)
    x = x_ref[...]
    o_ref[...] = x * s_ref[...].astype(x.dtype)   # math in the activation dtype


# ---------------------------------------------------------------------------
# Sizing helpers.
# ---------------------------------------------------------------------------
def _vmem_capacity_bytes():
    try:
        return int(pltpu.get_tpu_info().vmem_capacity_bytes)
    except Exception:
        return 64 * 1024 * 1024          # conservative (v7x per-TensorCore)


def _vmem_limit_bytes(needed_bytes, cap):
    # Actual footprint + headroom, capped well under physical VMEM so the
    # compiler keeps room for its internal scratch (matters on v7x's 64 MiB).
    return int(min(max(needed_bytes + (4 << 20), 16 << 20), int(0.6 * cap)))


def _pick_hw_tile(hw, c, itemsize, target_bytes):
    """Lane tile (multiple of 128) such that one (C, tile) block is ~target_bytes."""
    bytes_per_col = max(1, c * itemsize)
    tile = max(128, (int(target_bytes) // bytes_per_col) // 128 * 128)
    if tile >= hw:
        return hw, 1
    return tile, -(-hw // tile)


# ---------------------------------------------------------------------------
# Wrapper: PyTorch-compatible entry (NCHW, Linear weights are (out, in)).
# ---------------------------------------------------------------------------
def se_layer(x_nchw, w1, w2, *, fused_slab_cap_bytes=4 << 20,
             hw_tile_target_bytes=None, donate_input=False):
    """x: (B, C, H, W);  w1: (C//r, C);  w2: (C, C//r).  Returns (B, C, H, W)."""
    B, C, H, W = x_nchw.shape
    HW = H * W
    Cr = w1.shape[0]
    itemsize = x_nchw.dtype.itemsize

    x = x_nchw.reshape(B, C, HW)                  # free view: no transpose, no copy
    w1t = jnp.transpose(w1).astype(jnp.float32)   # (C, Cr) — tiny one-time reshuffle
    w2f = w2.astype(jnp.float32)                  # (C, Cr)

    cap = _vmem_capacity_bytes()
    if hw_tile_target_bytes is None:
        hw_tile_target_bytes = (4 << 20) if cap >= (100 << 20) else (2 << 20)

    wbytes = 2 * C * Cr * 4
    slab_bytes = C * HW * itemsize
    alias = {0: 0} if donate_input else {}

    # ---- fused single-pass path -------------------------------------------------
    if slab_bytes <= fused_slab_cap_bytes:
        vmem = _vmem_limit_bytes(4 * slab_bytes + 2 * wbytes, cap)
        out = pl.pallas_call(
            _make_fused_kernel(HW),
            out_shape=jax.ShapeDtypeStruct((B, C, HW), x.dtype),
            grid_spec=pltpu.PrefetchScalarGridSpec(
                num_scalar_prefetch=0,
                grid=(B,),
                in_specs=[pl.BlockSpec((1, C, HW), lambda b: (b, 0, 0)),
                          pl.BlockSpec((C, Cr), lambda b: (0, 0)),
                          pl.BlockSpec((C, Cr), lambda b: (0, 0))],
                out_specs=pl.BlockSpec((1, C, HW), lambda b: (b, 0, 0)),
            ),
            compiler_params=pltpu.CompilerParams(
                dimension_semantics=("parallel",), vmem_limit_bytes=vmem),
            input_output_aliases=alias,
        )(x, w1t, w2f)
        return out.reshape(B, C, H, W)

    # ---- two-pass streamed path -------------------------------------------------
    tile_hw, n_tiles = _pick_hw_tile(HW, C, itemsize, hw_tile_target_bytes)
    needs_mask = (HW % tile_hw) != 0
    block_bytes = C * tile_hw * itemsize
    vmem = _vmem_limit_bytes(4 * block_bytes + 2 * wbytes, cap)

    s = pl.pallas_call(
        _make_squeeze_excite_kernel(HW, tile_hw, n_tiles, needs_mask),
        out_shape=jax.ShapeDtypeStruct((B, C, 1), jnp.float32),
        grid_spec=pltpu.PrefetchScalarGridSpec(
            num_scalar_prefetch=0,
            grid=(B, n_tiles),                               # reduction axis last
            in_specs=[pl.BlockSpec((1, C, tile_hw), lambda b, t: (b, 0, t)),
                      pl.BlockSpec((C, Cr), lambda b, t: (0, 0)),
                      pl.BlockSpec((C, Cr), lambda b, t: (0, 0))],
            out_specs=pl.BlockSpec((1, C, 1), lambda b, t: (b, 0, 0)),
        ),
        compiler_params=pltpu.CompilerParams(
            dimension_semantics=("parallel", "arbitrary"), vmem_limit_bytes=vmem),
    )(x, w1t, w2f)

    out = pl.pallas_call(
        _rescale_kernel,
        out_shape=jax.ShapeDtypeStruct((B, C, HW), x.dtype),
        grid_spec=pltpu.PrefetchScalarGridSpec(
            num_scalar_prefetch=0,
            grid=(B, n_tiles),
            in_specs=[pl.BlockSpec((1, C, tile_hw), lambda b, t: (b, 0, t)),
                      pl.BlockSpec((1, C, 1), lambda b, t: (b, 0, 0))],
            out_specs=pl.BlockSpec((1, C, tile_hw), lambda b, t: (b, 0, t)),
        ),
        compiler_params=pltpu.CompilerParams(
            dimension_semantics=("parallel", "parallel"), vmem_limit_bytes=vmem),
        input_output_aliases=alias,
    )(x, s)
    return out.reshape(B, C, H, W)


def se_layer_ref(x, w1, w2):
    """Pure-JAX reference matching the PyTorch forward (NCHW)."""
    y = jnp.mean(x, axis=(2, 3))                   # AdaptiveAvgPool2d(1) + view(b, c)
    y = jnp.maximum(y @ w1.T, 0.0)                 # Linear(C, C//r, bias=False) + ReLU
    y = jax.nn.sigmoid(y @ w2.T)                   # Linear(C//r, C, bias=False) + Sigmoid
    return x * y[:, :, None, None]


if __name__ == "__main__":
    key = jax.random.PRNGKey(0)
    kx, kw1, kw2 = jax.random.split(key, 3)

    # Small test shape (fused single-pass path).
    B, C, H, W = 2, 4, 16, 16
    reduction = 4
    Cr = max(1, C // reduction)
    x = jax.random.normal(kx, (B, C, H, W), dtype=jnp.float32)
    w1 = jax.random.normal(kw1, (Cr, C), dtype=jnp.float32) * 0.5   # (out, in)
    w2 = jax.random.normal(kw2, (C, Cr), dtype=jnp.float32) * 0.5   # (out, in)

    out = jax.block_until_ready(se_layer(x, w1, w2))
    ref = se_layer_ref(x, w1, w2)
    assert out.shape == (B, C, H, W)
    assert jnp.allclose(out, ref, atol=1e-5, rtol=1e-5), "fused path mismatch"

    # Exercise the streamed two-pass path incl. tail-lane masking (HW=169, tile=128).
    B2, C2, H2, W2, Cr2 = 2, 8, 13, 13, 2
    x2 = jax.random.normal(kx, (B2, C2, H2, W2), dtype=jnp.float32)
    w1b = jax.random.normal(kw1, (Cr2, C2), dtype=jnp.float32) * 0.5
    w2b = jax.random.normal(kw2, (C2, Cr2), dtype=jnp.float32) * 0.5
    out2 = jax.block_until_ready(
        se_layer(x2, w1b, w2b, fused_slab_cap_bytes=0, hw_tile_target_bytes=4096))
    ref2 = se_layer_ref(x2, w1b, w2b)
    assert out2.shape == (B2, C2, H2, W2)
    assert jnp.allclose(out2, ref2, atol=1e-5, rtol=1e-5), "two-pass path mismatch"

    print("KERNEL_OK")
</pallas_src>

<mosaic_0001>
module attributes {stable_mosaic.version = 11 : i64} {
  func.func @kernel(%arg0: i32, %arg1: memref<1x4x256xf32, #tpu.memory_space<vmem>>, %arg2: memref<4x1xf32, #tpu.memory_space<vmem>>, %arg3: memref<4x1xf32, #tpu.memory_space<vmem>>, %arg4: memref<1x4x256xf32, #tpu.memory_space<vmem>>) attributes {dimension_semantics = [#tpu.dimension_semantics<parallel>], iteration_bounds = array<i64: 2>, scalar_prefetch = 0 : i64, scratch_operands = 0 : i64, tpu.core_type = #tpu.core_type<tc>, window_params = [{transform_indices = @transform_0, window_bounds = array<i64: 1, 4, 256>}, {pipeline_mode = #tpu.pipeline_mode<synchronous>, transform_indices = @transform_1, window_bounds = array<i64: 4, 1>}, {pipeline_mode = #tpu.pipeline_mode<synchronous>, transform_indices = @transform_2, window_bounds = array<i64: 4, 1>}, {transform_indices = @transform_3, window_bounds = array<i64: 1, 4, 256>}]} {
    %c0 = arith.constant 0 : index
    %c0_0 = arith.constant 0 : index
    %c0_1 = arith.constant 0 : index
    %0 = vector.load %arg1[%c0, %c0_0, %c0_1] : memref<1x4x256xf32, #tpu.memory_space<vmem>>, vector<1x4x256xf32>
    %1 = vector.shape_cast %0 : vector<1x4x256xf32> to vector<4x256xf32>
    %cst = arith.constant dense<0.000000e+00> : vector<4xf32>
    %2 = vector.multi_reduction <add>, %1, %cst [1] : vector<4x256xf32> to vector<4xf32>
    %3 = vector.shape_cast %2 : vector<4xf32> to vector<4x1xf32>
    %cst_2 = arith.constant 3.906250e-03 : f32
    %4 = vector.broadcast %cst_2 : f32 to vector<4x1xf32>
    %5 = arith.mulf %3, %4 : vector<4x1xf32>
    %c0_3 = arith.constant 0 : index
    %c0_4 = arith.constant 0 : index
    %6 = vector.load %arg2[%c0_3, %c0_4] : memref<4x1xf32, #tpu.memory_space<vmem>>, vector<4x1xf32>
    %7 = arith.mulf %5, %6 : vector<4x1xf32>
    %cst_5 = arith.constant dense<0.000000e+00> : vector<1xf32>
    %8 = vector.multi_reduction <add>, %7, %cst_5 [0] : vector<4x1xf32> to vector<1xf32>
    %9 = vector.shape_cast %8 : vector<1xf32> to vector<1x1xf32>
    %cst_6 = arith.constant 0.000000e+00 : f32
    %10 = vector.broadcast %cst_6 : f32 to vector<1x1xf32>
    %11 = arith.maximumf %9, %10 : vector<1x1xf32>
    %c0_7 = arith.constant 0 : index
    %c0_8 = arith.constant 0 : index
    %12 = vector.load %arg3[%c0_7, %c0_8] : memref<4x1xf32, #tpu.memory_space<vmem>>, vector<4x1xf32>
    %13 = vector.broadcast %11 : vector<1x1xf32> to vector<4x1xf32>
    %14 = arith.mulf %13, %12 : vector<4x1xf32>
    %cst_9 = arith.constant dense<0.000000e+00> : vector<4xf32>
    %15 = vector.multi_reduction <add>, %14, %cst_9 [1] : vector<4x1xf32> to vector<4xf32>
    %16 = vector.shape_cast %15 : vector<4xf32> to vector<4x1xf32>
    %cst_10 = arith.constant 0.000000e+00 : f32
    %17 = vector.broadcast %cst_10 : f32 to vector<4x1xf32>
    %18 = arith.subf %17, %16 : vector<4x1xf32>
    %19 = math.exp %18 : vector<4x1xf32>
    %cst_11 = arith.constant 1.000000e+00 : f32
    %20 = vector.broadcast %cst_11 : f32 to vector<4x1xf32>
    %21 = arith.addf %20, %19 : vector<4x1xf32>
    %cst_12 = arith.constant 1.000000e+00 : f32
    %22 = vector.broadcast %cst_12 : f32 to vector<4x1xf32>
    %23 = arith.divf %22, %21 : vector<4x1xf32>
    %24 = vector.broadcast %23 : vector<4x1xf32> to vector<4x256xf32>
    %25 = arith.mulf %1, %24 : vector<4x256xf32>
    %c0_13 = arith.constant 0 : index
    %c0_14 = arith.constant 0 : index
    %c0_15 = arith.constant 0 : index
    %26 = vector.load %arg4[%c0_13, %c0_14, %c0_15] : memref<1x4x256xf32, #tpu.memory_space<vmem>>, vector<1x4x256xf32>
    %27 = vector.shape_cast %26 : vector<1x4x256xf32> to vector<4x256xf32>
    %28 = vector.shape_cast %25 : vector<4x256xf32> to vector<1x4x256xf32>
    tpu.vector_store %arg4[%c0_13, %c0_14, %c0_15], %28 {strides = array<i32>} : memref<1x4x256xf32, #tpu.memory_space<vmem>>, vector<1x4x256xf32>,
    return
  }
  func.func @transform_0(%arg0: i32) -> (i32, i32, i32) {
    %c0_i32 = arith.constant 0 : i32
    %c0_i32_0 = arith.constant 0 : i32
    %c0_i32_1 = arith.constant 0 : i32
    return %arg0, %c0_i32, %c0_i32_0 : i32, i32, i32
  }
  func.func @transform_1(%arg0: i32) -> (i32, i32) {
    %c0_i32 = arith.constant 0 : i32
    %c0_i32_0 = arith.constant 0 : i32
    %c0_i32_1 = arith.constant 0 : i32
    return %c0_i32, %c0_i32_0 : i32, i32
  }
  func.func @transform_2(%arg0: i32) -> (i32, i32) {
    %c0_i32 = arith.constant 0 : i32
    %c0_i32_0 = arith.constant 0 : i32
    %c0_i32_1 = arith.constant 0 : i32
    return %c0_i32, %c0_i32_0 : i32, i32
  }
  func.func @transform_3(%arg0: i32) -> (i32, i32, i32) {
    %c0_i32 = arith.constant 0 : i32
    %c0_i32_0 = arith.constant 0 : i32
    %c0_i32_1 = arith.constant 0 : i32
    return %arg0, %c0_i32, %c0_i32_0 : i32, i32, i32
  }
}

</mosaic_0001>

<llo_original>
// kernel: tpu_custom_call.1
$region0: #{tpu_custom_call.1}
  #allocation0 [shape = 'u32[]', space=smem, size = 0x4, offset = 0x4, fixed_abs, tag = 'smem constant byte address 0x4 - core index']
  #allocation1 [shape = 'u32[144,128]{1,0:T(1,128)}', space=vmem, size = 0x12000, scoped, tag = 'internal scratch']
  %s0 = inlined_call_operand.hbm [shape: f32[2,4,256], index: 0, kind: input, shape index: {}]
  %s1 = inlined_call_operand.vmem [shape: f32[4,1], index: 1, kind: input, shape index: {}]
  %s2 = inlined_call_operand.vmem [shape: f32[4,1], index: 2, kind: input, shape index: {}]
  %s3 = inlined_call_operand.hbm [shape: f32[2,4,256], index: 3, kind: output, shape index: {}]
  %s4 = sld [smem:[#allocation0]]
  $region49: #{tpu_custom_call.1} parent=0
    _
  %s6 = ssub.s32 1, %s4
  %s7 = scalar_select 0, %s6, %s4
  $region1: #{tpu_custom_call.1} parent=0
    #allocation2 [shape = 'u8[8192]{0}', space=vmem, size = 0x2000, scoped, tag = 'input window, operand 0']
    #allocation3 [shape = 's32[2]{0}', space=sflag, size = 0x8, scoped, tag = 'scoped memory for tpu_custom_call.1']
    #allocation4 [shape = 's32[2]{0}', space=sflag, size = 0x8, scoped, tag = 'scoped memory for tpu_custom_call.1']
    #allocation5 [shape = 'u8[8192]{0}', space=vmem, size = 0x2000, scoped, tag = 'output window, operand 0']
    %8 = vsyncpa [#allocation3], 0
    %s9 = scalar_lea.sflag [#allocation3], 1
    %10 = vsyncpa %s9, 0
    %11 = vsyncpa [#allocation4], 0
    %s12 = scalar_lea.sflag [#allocation4], 1
    %13 = vsyncpa %s12, 0
    loop: start=0, step=1, limit=4
    $region2: #{tpu_custom_call.1} parent=1 // loop_pre_header
      _
    $region3: #{tpu_custom_call.1} parent=1 // loop_header
      %s15 = sphi 0, %s19
      %p16 = scmp.ge.s32.totalorder %s15, 4
      %s25 = sphi 0, %s27
      %s28 = sphi 0, %s25
      %s29 = sphi 0, %s28
      %s45 = sphi 0, %s29
      %s49 = sphi 0, %s49
      %s51 = sphi 0, %s49
      %s52 = sphi 0, %s51
      %s66 = sphi 0, %s52
      %s70 = sphi 0, %s70
      %s72 = sphi 0, %s70
      %s73 = sphi 0, %s72
      %s87 = sphi 0, %s73
      %s93 = sphi 0, %s95
      %s96 = sphi 0, %s93
      %s97 = sphi 0, %s96
      %s113 = sphi 0, %s97
    $region4: #{tpu_custom_call.1} parent=1 // loop_header_branch
      %18 = sbr.rel (%p16) target = $region8
    $region5: #{tpu_custom_call.1} parent=1 // loop_body
      %s20 = ssub.s32 %s15, 1
      %s21 = ssub.s32 %s15, 2
      %s22 = sadd.s32 %s15, 1
      %s23 = ssub.s32 %s15, %s22
      %p24 = scmp.eq.s32.totalorder %s23, 0
      %s26 = sadd.s32 %s25, 1
      %s27 = scalar_select %p24, %s25, %s26
      %p30 = pneg %p24
      %p31 = scmp.eq.s32.totalorder %s15, 1
      %p32 = por %p30, %p31
      %p33 = scmp.ne.s32.totalorder %s25, %s28
      %p34 = scmp.eq.s32.totalorder %s15, 0
      %p35 = por %p33, %p34
      %p36 = scmp.ne.s32.totalorder %s25, %s28
      %p37 = scmp.eq.s32.totalorder %s20, 1
      %p38 = por %p36, %p37
      %p39 = scmp.ne.s32.totalorder %s28, %s29
      %p40 = scmp.eq.s32.totalorder %s20, 0
      %p41 = por %p39, %p40
      %p42 = scmp.ne.s32.totalorder %s28, %s29
      %p43 = scmp.eq.s32.totalorder %s21, 1
      %p44 = por %p42, %p43
      %p46 = scmp.ne.s32.totalorder %s29, %s45
      %p47 = scmp.eq.s32.totalorder %s21, 0
      %p48 = por %p46, %p47
      %s50 = sadd.s32 %s49, 1
      %p53 = scmp.eq.s32.totalorder %s15, 1
      %p54 = scmp.ne.s32.totalorder %s49, %s51
      %p55 = scmp.eq.s32.totalorder %s15, 0
      %p56 = por %p54, %p55
      %p57 = scmp.ne.s32.totalorder %s49, %s51
      %p58 = scmp.eq.s32.totalorder %s20, 1
      %p59 = por %p57, %p58
      %p60 = scmp.ne.s32.totalorder %s51, %s52
      %p61 = scmp.eq.s32.totalorder %s20, 0
      %p62 = por %p60, %p61
      %p63 = scmp.ne.s32.totalorder %s51, %s52
      %p64 = scmp.eq.s32.totalorder %s21, 1
      %p65 = por %p63, %p64
      %p67 = scmp.ne.s32.totalorder %s52, %s66
      %p68 = scmp.eq.s32.totalorder %s21, 0
      %p69 = por %p67, %p68
      %s71 = sadd.s32 %s70, 1
      %p74 = scmp.eq.s32.totalorder %s15, 1
      %p75 = scmp.ne.s32.totalorder %s70, %s72
      %p76 = scmp.eq.s32.totalorder %s15, 0
      %p77 = por %p75, %p76
      %p78 = scmp.ne.s32.totalorder %s70, %s72
      %p79 = scmp.eq.s32.totalorder %s20, 1
      %p80 = por %p78, %p79
      %p81 = scmp.ne.s32.totalorder %s72, %s73
      %p82 = scmp.eq.s32.totalorder %s20, 0
      %p83 = por %p81, %p82
      %p84 = scmp.ne.s32.totalorder %s72, %s73
      %p85 = scmp.eq.s32.totalorder %s21, 1
      %p86 = por %p84, %p85
      %p88 = scmp.ne.s32.totalorder %s73, %s87
      %p89 = scmp.eq.s32.totalorder %s21, 0
      %p90 = por %p88, %p89
      %s91 = ssub.s32 %s15, %s22
      %p92 = scmp.eq.s32.totalorder %s91, 0
      %s94 = sadd.s32 %s93, 1
      %s95 = scalar_select %p92, %s93, %s94
      %p98 = pneg %p92
      %p99 = scmp.eq.s32.totalorder %s15, 1
      %p100 = por %p98, %p99
      %p101 = scmp.ne.s32.totalorder %s93, %s96
      %p102 = scmp.eq.s32.totalorder %s15, 0
      %p103 = por %p101, %p102
      %p104 = scmp.ne.s32.totalorder %s93, %s96
      %p105 = scmp.eq.s32.totalorder %s20, 1
      %p106 = por %p104, %p105
      %p107 = scmp.ne.s32.totalorder %s96, %s97
      %p108 = scmp.eq.s32.totalorder %s20, 0
      %p109 = por %p107, %p108
      %p110 = scmp.ne.s32.totalorder %s96, %s97
      %p111 = scmp.eq.s32.totalorder %s21, 1
      %p112 = por %p110, %p111
      %p114 = scmp.ne.s32.totalorder %s97, %s113
      %p115 = scmp.eq.s32.totalorder %s21, 0
      %p116 = por %p114, %p115
      %p117 = scmp.le.s32.totalorder 1, %s15
      %p118 = scmp.lt.s32.totalorder %s15, 3
      %p119 = pnand %p117, %p118
      %p120 = pneg %p119
      // Predicated region
      $region9: #{tpu_custom_call.1} parent=5 // pred_check
        _
      $region10: #{tpu_custom_call.1} parent=5 // pred_check_branch
        %122 = sbr.rel (%p119) target = $region12
      $region11: #{tpu_custom_call.1} parent=5 // pred_region
        %s123 = ssub.s32 %s15, 1
        // Predicated region
        $region13: #{tpu_custom_call.1} parent=11 // pred_check
          %p124 = pneg %p62
        $region14: #{tpu_custom_call.1} parent=11 // pred_check_branch
          %126 = sbr.rel (%p124) target = $region16
        $region15: #{tpu_custom_call.1} parent=11 // pred_region
          _
        $region16: #{tpu_custom_call.1} parent=11 // pred_fallthru
          _
        // Predicated region
        $region17: #{tpu_custom_call.1} parent=11 // pred_check
          %p127 = pneg %p83
        $region18: #{tpu_custom_call.1} parent=11 // pred_check_branch
          %129 = sbr.rel (%p127) target = $region20
        $region19: #{tpu_custom_call.1} parent=11 // pred_region
          _
        $region20: #{tpu_custom_call.1} parent=11 // pred_fallthru
          _
      $region12: #{tpu_custom_call.1} parent=5 // pred_fallthru
        _
      %p130 = scmp.lt.s32.totalorder %s15, 2
      // Predicated region
      $region21: #{tpu_custom_call.1} parent=5 // pred_check
        %p131 = pneg %p130
      $region22: #{tpu_custom_call.1} parent=5 // pred_check_branch
        %133 = sbr.rel (%p131) target = $region24
      $region23: #{tpu_custom_call.1} parent=5 // pred_region
        // Predicated region
        $region25: #{tpu_custom_call.1} parent=23 // pred_check
          %p134 = pneg %p35
        $region26: #{tpu_custom_call.1} parent=23 // pred_check_branch
          %136 = sbr.rel (%p134) target = $region28
        $region27: #{tpu_custom_call.1} parent=23 // pred_region
          %s137 = sand.u32 %s25, 1
          %s138 = scalar_lea.sflag [#allocation3], %s137
          %s139 = sand.u32 %s25, 1
          %s140 = smul.addr %s139, 8
          %s141 = scalar_lea.vmem [#allocation2], %s140
          %s143 = ssub.s32 128, 128
          %144 = vsyncadd %s138, %s143
          %s145 = smul.addr %s15, 2
          %s146 = smul.addr %s145, 64
          %s147 = scalar_lea.hbm %s0, %s146
          %s149 = sshll.u32 %s141, 4
          %s150 = int_to_ptr.vmem [resolvable:$true] %s149
          %152 = dma.hbm_to_vmem [thread:$0]  %s147, 128, %s150, %s138
        $region28: #{tpu_custom_call.1} parent=23 // pred_fallthru
          _
      $region24: #{tpu_custom_call.1} parent=5 // pred_fallthru
        _
      %p153 = scmp.le.s32.totalorder 1, %s15
      %p154 = scmp.lt.s32.totalorder %s15, 3
      %p155 = pnand %p153, %p154
      %p156 = pneg %p155
      // Predicated region
      $region29: #{tpu_custom_call.1} parent=5 // pred_check
        _
      $region30: #{tpu_custom_call.1} parent=5 // pred_check_branch
        %158 = sbr.rel (%p155) target = $region32
      $region31: #{tpu_custom_call.1} parent=5 // pred_region
        %s159 = ssub.s32 %s15, 1
        %s160 = sand.u32 %s28, 1
        %s161 = scalar_lea.sflag [#allocation3], %s160
        %s162 = sand.u32 %s28, 1
        %s163 = smul.addr %s162, 8
        %s164 = scalar_lea.vmem [#allocation2], %s163
        // Predicated region
        $region33: #{tpu_custom_call.1} parent=31 // pred_check
          %p165 = pneg %p41
        $region34: #{tpu_custom_call.1} parent=31 // pred_check_branch
          %167 = sbr.rel (%p165) target = $region36
        $region35: #{tpu_custom_call.1} parent=31 // pred_region
          %168 = dma.done %s161, 128
        $region36: #{tpu_custom_call.1} parent=31 // pred_fallthru
          _
        %s169 = sand.u32 %s28, 1
        %s170 = scalar_lea.sflag [#allocation3], %s169
        %s171 = sand.u32 %s28, 1
        %s172 = smul.addr %s171, 8
        %s173 = scalar_lea.vmem [#allocation2], %s172
        %p174 = pneg %p41
        %p175 = pneg %p38
        %p176 = pneg %p62
        %p177 = pneg %p59
        %p178 = pneg %p83
        %p179 = pneg %p80
        %p180 = pneg %p109
        %p181 = pneg %p106
        %s182 = sand.u32 %s96, 1
        %s183 = scalar_lea.sflag [#allocation4], %s182
        %s184 = sand.u32 %s96, 1
        %s185 = smul.addr %s184, 8
        %s186 = scalar_lea.vmem [#allocation5], %s185
        %v187 = vld [vmem:[%s164] sm:$0xff]
        %v189 = vcombine.high %v187, %v187
        %vm191 = vcmask 1043456
        %v192 = vsel %vm191, %v187, 0.0
        %v193 = vsel %vm191, %v189, 0.0
        %v194 = vadd.f32 %v192, %v193
        %195 = vadd.xlane.f32.xlu0 %v194
        %v196 = vpop.xlane.xlu0 %195
        %v197 = vmul.f32 %v196, 0.00390625
        %v198 = vld [vmem:[%s1] sm:$0xf]
        %v199 = vmul.f32 %v197, %v198
        %vm200 = vcmask 3072
        %v201 = vsel %vm200, %v199, 0.0
        %v202 = vrot.slane %v201, 4
        %v203 = vadd.f32 %v201, %v202
        %v204 = vrot.slane %v203, 2
        %v205 = vadd.f32 %v203, %v204
        %v206 = vrot.slane %v205, 1
        %v207 = vadd.f32 %v205, %v206
        %v208 = vmax.f32 %v207, 0.0
        %v209 = vld [vmem:[%s2] sm:$0xf]
        %v210 = vmul.f32 %v208, %v209
        %v211 = vadd.f32 %v210, 0.0
        %v212 = vsub.f32 0.0, %v211
        %v213 = vmul.f32 %v212, 1.442695
        %v214 = vpow.pop %v213
        %v215 = vadd.f32 %v214, 1.0
        %v216 = vrcp.pop %v215
        %v217 = vmul.f32 1.0, %v216
        %219 = vset.pattern.permute.xlu0 0
        %220 = vperm.xlu0 %219, %v217
        %v221 = vpop.permute.xlu0 %220
        %v223 = vunpack.c.l.s4 839922192
        %v224 = vunpack.c.0.s8 %v223
        %v225 = vlaneseq
        %v226 = vshrl.u32 %v225, 7
        %v227 = vsub.s32 %v224, %v226
        %v228 = vrot.slane %v221, %v227
        %v230 = vmul.f32 %v187, %v228
        %231 = vst [vmem:[%s186] sm:$0xff] %v230
        %s232 = sand.u32 %s96, 1
        %s233 = scalar_lea.sflag [#allocation4], %s232
        %s234 = sand.u32 %s96, 1
        %s235 = smul.addr %s234, 8
        %s236 = scalar_lea.vmem [#allocation5], %s235
        // Predicated region
        $region37: #{tpu_custom_call.1} parent=31 // pred_check
          %p237 = pneg %p106
        $region38: #{tpu_custom_call.1} parent=31 // pred_check_branch
          %239 = sbr.rel (%p237) target = $region40
        $region39: #{tpu_custom_call.1} parent=31 // pred_region
          %s241 = ssub.s32 128, 128
          %242 = vsyncadd %s233, %s241
          %s243 = smul.addr %s20, 2
          %s244 = smul.addr %s243, 64
          %s245 = scalar_lea.hbm %s3, %s244
          %s247 = sshll.u32 %s236, 4
          %s248 = int_to_ptr.vmem [resolvable:$true] %s247
          %250 = dma.vmem_to_hbm [thread:$0]  %s248, 128, %s245, %s233
        $region40: #{tpu_custom_call.1} parent=31 // pred_fallthru
          _
      $region32: #{tpu_custom_call.1} parent=5 // pred_fallthru
        _
      %p251 = scmp.le.s32.totalorder 2, %s15
      // Predicated region
      $region41: #{tpu_custom_call.1} parent=5 // pred_check
        %p252 = pneg %p251
      $region42: #{tpu_custom_call.1} parent=5 // pred_check_branch
        %254 = sbr.rel (%p252) target = $region44
      $region43: #{tpu_custom_call.1} parent=5 // pred_region
        %s255 = ssub.s32 %s15, 2
        // Predicated region
        $region45: #{tpu_custom_call.1} parent=43 // pred_check
          %p256 = pneg %p112
        $region46: #{tpu_custom_call.1} parent=43 // pred_check_branch
          %258 = sbr.rel (%p256) target = $region48
        $region47: #{tpu_custom_call.1} parent=43 // pred_region
          %s259 = sand.u32 %s97, 1
          %s260 = scalar_lea.sflag [#allocation4], %s259
          %s261 = sand.u32 %s97, 1
          %s262 = smul.addr %s261, 8
          %s263 = scalar_lea.vmem [#allocation5], %s262
          %264 = dma.done %s260, 128
        $region48: #{tpu_custom_call.1} parent=43 // pred_fallthru
          _
      $region44: #{tpu_custom_call.1} parent=5 // pred_fallthru
        _
    $region6: #{tpu_custom_call.1} parent=1 // loop_footer
      %s19 = sadd.s32 1, %s15
    $region7: #{tpu_custom_call.1} parent=1 // loop_footer_branch
      %14 = sbr.rel target = $region3
    $region8: #{tpu_custom_call.1} parent=1 // loop_exit
      _
    %265 = vsyncpa [#allocation3], 1
    %s266 = scalar_lea.sflag [#allocation3], 1
    %267 = vsyncpa %s266, 1
    %268 = vsyncpa [#allocation4], 1
    %s269 = scalar_lea.sflag [#allocation4], 1
    %270 = vsyncpa %s269, 1

</llo_original>
